<compile_context>
chip_gen: v5e
topology: v5e:2x2
jax: 0.10.0
libtpu: 0.0.40
codegen_flags: <defaults>
</compile_context>

<pallas_src>
import functools

import jax
import jax.numpy as jnp
from jax import lax
from jax.experimental import pallas as pl
from jax.experimental.pallas import tpu as pltpu


def _pick_tile(n, target, mult):
    """Largest divisor of n that is <= target and a multiple of `mult`; falls back to n."""
    if n <= target:
        return n
    for t in range(min(n, target), 0, -1):
        if n % t == 0 and t % mult == 0:
            return t
    return n


# ---------------------------------------------------------------------------
# 1. QKV projection: one (tm, E) x (E, dh_pad) matmul per (q|k|v, head) grid cell.
# ---------------------------------------------------------------------------
def qkv_proj_kernel(x_ref, w_ref, o_ref):
    # x_ref: (tm, E) f32, w_ref: (1, E, dh_pad) bf16, o_ref: (1, tm, dh_pad) bf16
    o_ref[0] = jnp.dot(
        x_ref[...].astype(jnp.bfloat16), w_ref[0],
        preferred_element_type=jnp.float32).astype(o_ref.dtype)


# ---------------------------------------------------------------------------
# 2. Flash attention (causal, online softmax), grid = (B, H, q_tiles, kv_tiles).
# ---------------------------------------------------------------------------
def flash_attn_kernel(q_ref, k_ref, v_ref, o_ref, m_ref, l_ref, acc_ref,
                      *, tq, tk, scale):
    qi = pl.program_id(2)
    ki = pl.program_id(3)

    @pl.when(ki == 0)
    def _init():
        m_ref[...] = jnp.full(m_ref.shape, -1e30, jnp.float32)
        l_ref[...] = jnp.zeros(l_ref.shape, jnp.float32)
        acc_ref[...] = jnp.zeros(acc_ref.shape, jnp.float32)

    # Structural causal skip: tile is fully masked iff its first key column > last query row.
    @pl.when(ki * tk <= qi * tq + (tq - 1))
    def _compute():
        q = q_ref[0, 0]                                    # (tq, dh_pad) bf16
        k = k_ref[0, 0]                                    # (tk, dh_pad) bf16
        v = v_ref[0, 0]                                    # (tk, dh_pad) bf16
        s = lax.dot_general(q, k, (((1,), (1,)), ((), ())),
                            preferred_element_type=jnp.float32) * scale  # (tq, tk) f32
        row = qi * tq + lax.broadcasted_iota(jnp.int32, (tq, tk), 0)
        col = ki * tk + lax.broadcasted_iota(jnp.int32, (tq, tk), 1)
        s = jnp.where(col > row, -1e30, s)                 # strict upper triangle masked

        m_prev = m_ref[...]
        m_new = jnp.maximum(m_prev, jnp.max(s, axis=-1, keepdims=True))
        alpha = jnp.exp(m_prev - m_new)
        p = jnp.exp(s - m_new)
        l_ref[...] = alpha * l_ref[...] + jnp.sum(p, axis=-1, keepdims=True)
        acc_ref[...] = alpha * acc_ref[...] + jnp.dot(
            p.astype(jnp.bfloat16), v, preferred_element_type=jnp.float32)
        m_ref[...] = m_new

    @pl.when(ki == pl.num_programs(3) - 1)
    def _finalize():
        inv_l = pl.reciprocal(l_ref[...], approx=True)     # EUP slot, frees VALU
        o_ref[0] = (acc_ref[...] * inv_l).astype(o_ref.dtype)


# ---------------------------------------------------------------------------
# 3. W0 projection + residual/LN1 + FFN (hidden dim streamed) + residual/LN2.
# ---------------------------------------------------------------------------
def _layernorm(z, g, b, eps=1e-5):
    mu = jnp.mean(z, axis=-1, keepdims=True)
    var = jnp.mean((z - mu) ** 2, axis=-1, keepdims=True)
    return (z - mu) * lax.rsqrt(var + eps) * g + b


def mlp_kernel(x_ref, ctx_ref, w0_ref, w1_ref, b1_ref, w2_ref, b2_ref,
               g1_ref, be1_ref, g2_ref, be2_ref, o_ref,
               h1_ref, acc_ref):
    kt = pl.program_id(1)

    @pl.when(kt == 0)
    def _init():
        # Heads are already concatenated lane-dense in ctx (padded columns are zero and W0
        # has matching zero rows), so this is a single (tm, H*dh_pad) x (H*dh_pad, E) matmul.
        attn = jnp.dot(ctx_ref[...], w0_ref[...], preferred_element_type=jnp.float32)
        h1 = _layernorm(attn + x_ref[...], g1_ref[...], be1_ref[...])
        h1_ref[...] = h1
        acc_ref[...] = jnp.zeros(acc_ref.shape, jnp.float32)

    # One tile of the 4E hidden dim: relu(h1 @ W1[:, kt] + b1[kt]) @ W2[kt, :]
    ff = jnp.dot(h1_ref[...].astype(jnp.bfloat16), w1_ref[...],
                 preferred_element_type=jnp.float32) + b1_ref[...]
    ff = jnp.maximum(ff, 0.0)
    acc_ref[...] += jnp.dot(ff.astype(jnp.bfloat16), w2_ref[...],
                            preferred_element_type=jnp.float32)

    @pl.when(kt == pl.num_programs(1) - 1)
    def _finalize():
        h2 = acc_ref[...] + b2_ref[...] + h1_ref[...]
        o_ref[...] = _layernorm(h2, g2_ref[...], be2_ref[...]).astype(o_ref.dtype)


# ---------------------------------------------------------------------------
# Wrapper
# ---------------------------------------------------------------------------
def transformer_block(x, params, *, num_heads):
    B, S, E = x.shape
    assert E % num_heads == 0
    H = num_heads
    dh = E // H
    dh_pad = ((dh + 127) // 128) * 128 if dh > 128 else 128   # lane-dense head dim
    H4 = 4 * E
    rows = B * S

    wq, wk, wv, w0, w1, b1, w2, b2, g1, be1, g2, be2 = params

    # --- one-time weight layout prep (lane-dense, bf16) ---------------------------------
    def per_head_padded(w):           # (E, E) packed per head along axis 1 -> (H, E, dh_pad)
        wh = w.reshape(E, H, dh).transpose(1, 0, 2)
        return jnp.pad(wh, ((0, 0), (0, 0), (0, dh_pad - dh)))

    wqkv = jnp.concatenate(
        [per_head_padded(wq), per_head_padded(wk), per_head_padded(wv)],
        axis=0).astype(jnp.bfloat16)                                      # (3H, E, dh_pad)
    w0p = jnp.pad(w0.reshape(H, dh, E), ((0, 0), (0, dh_pad - dh), (0, 0))
                  ).reshape(H * dh_pad, E).astype(jnp.bfloat16)           # (H*dh_pad, E)
    w1b = w1.astype(jnp.bfloat16)                                         # (E, 4E)
    w2b = w2.astype(jnp.bfloat16)                                         # (4E, E)

    x2d = x.reshape(rows, E).astype(jnp.float32)

    tm = _pick_tile(rows, 256, 8)       # row tile for the position-wise matmuls
    tq = _pick_tile(S, 128, 8)          # query tile
    tk = _pick_tile(S, 128, 8)          # key/value tile
    th = _pick_tile(H4, 512, 128)       # FFN hidden tile (streams W1/W2)
    scale = 1.0 / float(E) ** 0.5       # 1/sqrt(embedding_size), per reference module

    vmem_limit = 32 * 1024 * 1024

    # ---------------- 1. QKV projection --------------------------------------------------
    qkv = pl.pallas_call(
        qkv_proj_kernel,
        out_shape=jax.ShapeDtypeStruct((3 * H, rows, dh_pad), jnp.bfloat16),
        grid=(rows // tm, 3 * H),
        in_specs=[
            pl.BlockSpec((tm, E), lambda i, j: (i, 0)),            # x tile reused across j
            pl.BlockSpec((1, E, dh_pad), lambda i, j: (j, 0, 0)),  # per-(q|k|v, head) weight
        ],
        out_specs=pl.BlockSpec((1, tm, dh_pad), lambda i, j: (j, i, 0)),
        compiler_params=pltpu.CompilerParams(
            dimension_semantics=("parallel", "parallel"),
            vmem_limit_bytes=vmem_limit),
        cost_estimate=pl.CostEstimate(
            flops=2 * rows * E * 3 * H * dh_pad,
            transcendentals=0,
            bytes_accessed=rows * E * 4 + 3 * H * E * dh_pad * 2 + 3 * H * rows * dh_pad * 2),
    )(x2d, wqkv)

    qkv4 = qkv.reshape(3 * H, B, S, dh_pad)          # major-axis split only; no relayout

    # ---------------- 2. Flash attention (causal) ----------------------------------------
    ctx = pl.pallas_call(
        functools.partial(flash_attn_kernel, tq=tq, tk=tk, scale=scale),
        out_shape=jax.ShapeDtypeStruct((B, S, H * dh_pad), jnp.bfloat16),
        grid=(B, H, S // tq, S // tk),
        in_specs=[
            pl.BlockSpec((1, 1, tq, dh_pad), lambda b, h, qi, ki: (h, b, qi, 0)),          # Q
            pl.BlockSpec((1, 1, tk, dh_pad), lambda b, h, qi, ki: (H + h, b, ki, 0)),      # K
            pl.BlockSpec((1, 1, tk, dh_pad), lambda b, h, qi, ki: (2 * H + h, b, ki, 0)),  # V
        ],
        out_specs=pl.BlockSpec((1, tq, dh_pad), lambda b, h, qi, ki: (b, qi, h)),
        scratch_shapes=[
            pltpu.VMEM((tq, 1), jnp.float32),        # running max
            pltpu.VMEM((tq, 1), jnp.float32),        # running denominator
            pltpu.VMEM((tq, dh_pad), jnp.float32),   # output accumulator
        ],
        compiler_params=pltpu.CompilerParams(
            dimension_semantics=("parallel", "parallel", "parallel", "arbitrary"),
            vmem_limit_bytes=vmem_limit),
        cost_estimate=pl.CostEstimate(
            flops=4 * B * H * S * S * dh_pad,
            transcendentals=B * H * S * S,
            bytes_accessed=3 * H * B * S * dh_pad * 2 + B * S * H * dh_pad * 2),
    )(qkv4, qkv4, qkv4)

    ctx2d = ctx.reshape(rows, H * dh_pad)

    # ---------------- 3. W0 + residual/LN1 + FFN + residual/LN2 --------------------------
    out2d = pl.pallas_call(
        mlp_kernel,
        out_shape=jax.ShapeDtypeStruct((rows, E), x.dtype),
        grid=(rows // tm, H4 // th),
        in_specs=[
            pl.BlockSpec((tm, E), lambda i, kt: (i, 0)),              # x (residual), f32
            pl.BlockSpec((tm, H * dh_pad), lambda i, kt: (i, 0)),     # attention heads, bf16
            pl.BlockSpec((H * dh_pad, E), lambda i, kt: (0, 0)),      # W0, bf16
            pl.BlockSpec((E, th), lambda i, kt: (0, kt)),             # W1 tile, bf16
            pl.BlockSpec((1, th), lambda i, kt: (0, kt)),             # b1 tile
            pl.BlockSpec((th, E), lambda i, kt: (kt, 0)),             # W2 tile, bf16
            pl.BlockSpec((1, E), lambda i, kt: (0, 0)),               # b2
            pl.BlockSpec((1, E), lambda i, kt: (0, 0)),               # gamma1
            pl.BlockSpec((1, E), lambda i, kt: (0, 0)),               # beta1
            pl.BlockSpec((1, E), lambda i, kt: (0, 0)),               # gamma2
            pl.BlockSpec((1, E), lambda i, kt: (0, 0)),               # beta2
        ],
        out_specs=pl.BlockSpec((tm, E), lambda i, kt: (i, 0)),
        scratch_shapes=[
            pltpu.VMEM((tm, E), jnp.float32),     # h1 (post-LN1), reused by second residual
            pltpu.VMEM((tm, E), jnp.float32),     # FFN output accumulator over hidden tiles
        ],
        compiler_params=pltpu.CompilerParams(
            dimension_semantics=("parallel", "arbitrary"),
            vmem_limit_bytes=vmem_limit),
        cost_estimate=pl.CostEstimate(
            flops=2 * rows * (H * dh_pad * E + 2 * E * H4),
            transcendentals=0,
            bytes_accessed=(rows * (E * 4 * 2 + H * dh_pad * 2)
                            + (H * dh_pad * E + 2 * E * H4) * 2)),
    )(x2d, ctx2d, w0p, w1b, b1, w2b, b2, g1, be1, g2, be2)

    return out2d.reshape(B, S, E)


# ---------------------------------------------------------------------------
# Pure-JAX reference mirroring the PyTorch forward (eval-mode dropout).
# matmul_dtype=bf16 emulates the kernel's bf16-operand / f32-accumulate matmuls.
# ---------------------------------------------------------------------------
def reference_block(x, params, *, num_heads, matmul_dtype=jnp.float32):
    wq, wk, wv, w0, w1, b1, w2, b2, g1, be1, g2, be2 = params
    B, S, E = x.shape
    dh = E // num_heads
    xf = x.astype(jnp.float32)

    def c(a):
        return a.astype(matmul_dtype)

    q = jnp.einsum('bse,ef->bsf', c(xf), c(wq),
                   preferred_element_type=jnp.float32).reshape(B, S, num_heads, dh)
    k = jnp.einsum('bse,ef->bsf', c(xf), c(wk),
                   preferred_element_type=jnp.float32).reshape(B, S, num_heads, dh)
    v = jnp.einsum('bse,ef->bsf', c(xf), c(wv),
                   preferred_element_type=jnp.float32).reshape(B, S, num_heads, dh)

    s = jnp.einsum('bqhd,bkhd->bhqk', c(q), c(k),
                   preferred_element_type=jnp.float32) / jnp.sqrt(float(E))
    mask = jnp.triu(jnp.ones((S, S), bool), k=1)
    s = jnp.where(mask[None, None], -jnp.inf, s)
    p = jax.nn.softmax(s, axis=-1)
    o = jnp.einsum('bhqk,bkhd->bqhd', c(p), c(v),
                   preferred_element_type=jnp.float32).reshape(B, S, E)
    attn = jnp.einsum('bse,ef->bsf', c(o), c(w0), preferred_element_type=jnp.float32)

    def ln(z, g, b):
        mu = jnp.mean(z, axis=-1, keepdims=True)
        var = jnp.mean((z - mu) ** 2, axis=-1, keepdims=True)
        return (z - mu) * lax.rsqrt(var + 1e-5) * g + b

    h1 = ln(attn + xf, g1, be1)
    ff = jnp.maximum(jnp.einsum('bse,eh->bsh', c(h1), c(w1),
                                preferred_element_type=jnp.float32) + b1, 0.0)
    ff = jnp.einsum('bsh,he->bse', c(ff), c(w2), preferred_element_type=jnp.float32) + b2
    return ln(ff + h1, g2, be2)


def init_params(key, E, num_heads):
    dh = E // num_heads
    H4 = 4 * E
    ks = jax.random.split(key, 8)

    def xavier(k, shape):
        std = (2.0 / (shape[0] + shape[1])) ** 0.5
        return std * jax.random.normal(k, shape, jnp.float32)

    # Per-head xavier_normal(E, dh) weights packed along the output dimension.
    def packed_heads(k):
        kh = jax.random.split(k, num_heads)
        return jnp.concatenate([xavier(kh[h], (E, dh)) for h in range(num_heads)], axis=1)

    wq = packed_heads(ks[0])
    wk = packed_heads(ks[1])
    wv = packed_heads(ks[2])
    w0 = xavier(ks[3], (E, E))

    # nn.Linear default init ~ U(-1/sqrt(fan_in), 1/sqrt(fan_in)); stored pre-transposed (in, out).
    lim1 = 1.0 / (E ** 0.5)
    w1 = jax.random.uniform(ks[4], (E, H4), jnp.float32, -lim1, lim1)
    b1 = jax.random.uniform(ks[5], (1, H4), jnp.float32, -lim1, lim1)
    lim2 = 1.0 / (H4 ** 0.5)
    w2 = jax.random.uniform(ks[6], (H4, E), jnp.float32, -lim2, lim2)
    b2 = jax.random.uniform(ks[7], (1, E), jnp.float32, -lim2, lim2)

    g1 = jnp.ones((1, E), jnp.float32)
    be1 = jnp.zeros((1, E), jnp.float32)
    g2 = jnp.ones((1, E), jnp.float32)
    be2 = jnp.zeros((1, E), jnp.float32)
    return (wq, wk, wv, w0, w1, b1, w2, b2, g1, be1, g2, be2)


if __name__ == "__main__":
    # Small TransformerConfig: embedding_size=32, num_heads=8, seq=8, batch=2, masked=True.
    B, S, E, H = 2, 8, 32, 8
    key = jax.random.PRNGKey(0)
    kx, kp = jax.random.split(key)
    x = jax.random.normal(kx, (B, S, E), jnp.float32)
    params = init_params(kp, E, H)

    out = transformer_block(x, params, num_heads=H)
    out = jax.block_until_ready(out)
    assert out.shape == (B, S, E)

    # Compare against a reference that emulates the kernel's bf16-operand matmuls.
    ref = reference_block(x, params, num_heads=H, matmul_dtype=jnp.bfloat16)
    err = float(jnp.max(jnp.abs(out - ref)))
    assert jnp.allclose(out, ref, atol=2e-2, rtol=2e-2), err
    print("KERNEL_OK")
</pallas_src>

<mosaic_0001>
module attributes {stable_mosaic.version = 11 : i64} {
  func.func @qkv_proj_kernel(%arg0: i32, %arg1: i32, %arg2: memref<16x32xf32, #tpu.memory_space<vmem>>, %arg3: memref<1x32x128xbf16, #tpu.memory_space<vmem>>, %arg4: memref<1x16x128xbf16, #tpu.memory_space<vmem>>) attributes {dimension_semantics = [#tpu.dimension_semantics<parallel>, #tpu.dimension_semantics<parallel>], iteration_bounds = array<i64: 1, 24>, scalar_prefetch = 0 : i64, scratch_operands = 0 : i64, tpu.core_type = #tpu.core_type<tc>, window_params = [{transform_indices = @transform_0, window_bounds = array<i64: 16, 32>}, {transform_indices = @transform_1, window_bounds = array<i64: 1, 32, 128>}, {transform_indices = @transform_2, window_bounds = array<i64: 1, 16, 128>}]} {
    %c0 = arith.constant 0 : index
    %c0_0 = arith.constant 0 : index
    %0 = vector.load %arg2[%c0, %c0_0] : memref<16x32xf32, #tpu.memory_space<vmem>>, vector<16x32xf32>
    %1 = arith.truncf %0 : vector<16x32xf32> to vector<16x32xbf16>
    %c0_1 = arith.constant 0 : index
    %c0_2 = arith.constant 0 : index
    %c0_3 = arith.constant 0 : index
    %2 = vector.load %arg3[%c0_1, %c0_2, %c0_3] : memref<1x32x128xbf16, #tpu.memory_space<vmem>>, vector<1x32x128xbf16>
    %3 = vector.shape_cast %2 : vector<1x32x128xbf16> to vector<32x128xbf16>
    %cst = arith.constant dense<0.000000e+00> : vector<16x128xf32>
    %4 = tpu.matmul %1, %3, %cst {dimension_numbers = #tpu.dot_dimension_numbers<[1], [0], [0], [1], [0, 0, 1, 1], [], []>} : vector<16x32xbf16>, vector<32x128xbf16>, vector<16x128xf32> -> vector<16x128xf32>
    %5 = arith.truncf %4 : vector<16x128xf32> to vector<16x128xbf16>
    %c0_4 = arith.constant 0 : index
    %c0_5 = arith.constant 0 : index
    %c0_6 = arith.constant 0 : index
    %6 = vector.load %arg4[%c0_4, %c0_5, %c0_6] : memref<1x16x128xbf16, #tpu.memory_space<vmem>>, vector<1x16x128xbf16>
    %7 = vector.shape_cast %6 : vector<1x16x128xbf16> to vector<16x128xbf16>
    %8 = vector.shape_cast %5 : vector<16x128xbf16> to vector<1x16x128xbf16>
    tpu.vector_store %arg4[%c0_4, %c0_5, %c0_6], %8 {strides = array<i32>} : memref<1x16x128xbf16, #tpu.memory_space<vmem>>, vector<1x16x128xbf16>,
    return
  }
  func.func @transform_0(%arg0: i32, %arg1: i32) -> (i32, i32) {
    %c0_i32 = arith.constant 0 : i32
    %c0_i32_0 = arith.constant 0 : i32
    return %arg0, %c0_i32 : i32, i32
  }
  func.func @transform_1(%arg0: i32, %arg1: i32) -> (i32, i32, i32) {
    %c0_i32 = arith.constant 0 : i32
    %c0_i32_0 = arith.constant 0 : i32
    %c0_i32_1 = arith.constant 0 : i32
    return %arg1, %c0_i32, %c0_i32_0 : i32, i32, i32
  }
  func.func @transform_2(%arg0: i32, %arg1: i32) -> (i32, i32, i32) {
    %c0_i32 = arith.constant 0 : i32
    %c0_i32_0 = arith.constant 0 : i32
    return %arg1, %arg0, %c0_i32 : i32, i32, i32
  }
}

</mosaic_0001>

<llo_original>
// kernel: tpu_custom_call.1
$region0: #{tpu_custom_call.1}
  #allocation0 [shape = 'u32[]', space=smem, size = 0x4, offset = 0x4, fixed_abs, tag = 'smem constant byte address 0x4 - core index']
  #allocation1 [shape = 'u32[72,128]{1,0:T(1,128)}', space=vmem, size = 0x9000, scoped, tag = 'internal scratch']
  %s0 = inlined_call_operand.hbm [shape: f32[16,32], index: 0, kind: input, shape index: {}]
  %s1 = inlined_call_operand.hbm [shape: bf16[24,32,128], index: 1, kind: input, shape index: {}]
  %s2 = inlined_call_operand.hbm [shape: bf16[24,16,128], index: 2, kind: output, shape index: {}]
  %s3 = sld [smem:[#allocation0]]
  $region49: #{tpu_custom_call.1} parent=0
    _
  %s5 = ssub.s32 1, %s3
  %s6 = scalar_select 0, %s5, %s3
  $region1: #{tpu_custom_call.1} parent=0
    #allocation2 [shape = 'u8[8192]{0}', space=vmem, size = 0x2000, scoped, tag = 'input window, operand 0, single buffered']
    #allocation3 [shape = 's32[2]{0}', space=sflag, size = 0x8, scoped, tag = 'scoped memory for tpu_custom_call.1']
    #allocation4 [shape = 's32[2]{0}', space=sflag, size = 0x8, scoped, tag = 'scoped memory for tpu_custom_call.1']
    #allocation5 [shape = 'u8[16384]{0}', space=vmem, size = 0x4000, scoped, tag = 'input window, operand 1']
    #allocation6 [shape = 's32[2]{0}', space=sflag, size = 0x8, scoped, tag = 'scoped memory for tpu_custom_call.1']
    #allocation7 [shape = 'u8[8192]{0}', space=vmem, size = 0x2000, scoped, tag = 'output window, operand 0']
    %7 = vsyncpa [#allocation3], 0
    %8 = vsyncpa [#allocation6], 0
    %s9 = scalar_lea.sflag [#allocation6], 1
    %10 = vsyncpa %s9, 0
    %11 = vsyncpa [#allocation4], 0
    %s12 = scalar_lea.sflag [#allocation4], 1
    %13 = vsyncpa %s12, 0
    loop: start=0, step=1, limit=26
    $region2: #{tpu_custom_call.1} parent=1 // loop_pre_header
      _
    $region3: #{tpu_custom_call.1} parent=1 // loop_header
      %s15 = sphi 0, %s19
      %p16 = scmp.ge.s32.totalorder %s15, 26
      %s22 = sphi 0, %s34
      %s23 = sphi 0, %s30
      %s24 = sphi 0, %s22
      %s25 = sphi 0, %s23
      %s26 = sphi 0, %s24
      %s27 = sphi 0, %s25
      %s37 = sphi 0, %s39
      %s40 = sphi 0, %s37
      %s41 = sphi 0, %s40
      %s57 = sphi 0, %s41
      %s63 = sphi 0, %s65
      %s66 = sphi 0, %s63
      %s67 = sphi 0, %s66
      %s83 = sphi 0, %s67
      %s91 = sphi 0, %s93
      %s94 = sphi 0, %s91
      %s95 = sphi 0, %s94
      %s111 = sphi 0, %s95
    $region4: #{tpu_custom_call.1} parent=1 // loop_header_branch
      %18 = sbr.rel (%p16) target = $region8
    $region5: #{tpu_custom_call.1} parent=1 // loop_body
      %s20 = ssub.s32 %s15, 1
      %s21 = ssub.s32 %s15, 2
      %s28 = sadd.s32 1, %s23
      %p29 = scmp.ge.s32.totalorder %s28, 24
      %s30 = scalar_select %p29, 0, %s28
      %s31 = sadd.s32 1, %s22
      %s32 = scalar_select %p29, %s31, %s22
      %p33 = scmp.ge.s32.totalorder %s32, 1
      %s34 = scalar_select %p33, 0, %s32
      %s35 = ssub.s32 %s22, %s34
      %p36 = scmp.eq.s32.totalorder %s35, 0
      %s38 = sadd.s32 %s37, 1
      %s39 = scalar_select %p36, %s37, %s38
      %p42 = pneg %p36
      %p43 = scmp.eq.s32.totalorder %s15, 23
      %p44 = por %p42, %p43
      %p45 = scmp.ne.s32.totalorder %s37, %s40
      %p46 = scmp.eq.s32.totalorder %s15, 0
      %p47 = por %p45, %p46
      %p48 = scmp.ne.s32.totalorder %s37, %s40
      %p49 = scmp.eq.s32.totalorder %s20, 23
      %p50 = por %p48, %p49
      %p51 = scmp.ne.s32.totalorder %s40, %s41
      %p52 = scmp.eq.s32.totalorder %s20, 0
      %p53 = por %p51, %p52
      %p54 = scmp.ne.s32.totalorder %s40, %s41
      %p55 = scmp.eq.s32.totalorder %s21, 23
      %p56 = por %p54, %p55
      %p58 = scmp.ne.s32.totalorder %s41, %s57
      %p59 = scmp.eq.s32.totalorder %s21, 0
      %p60 = por %p58, %p59
      %s61 = ssub.s32 %s23, %s30
      %p62 = scmp.eq.s32.totalorder %s61, 0
      %s64 = sadd.s32 %s63, 1
      %s65 = scalar_select %p62, %s63, %s64
      %p68 = pneg %p62
      %p69 = scmp.eq.s32.totalorder %s15, 23
      %p70 = por %p68, %p69
      %p71 = scmp.ne.s32.totalorder %s63, %s66
      %p72 = scmp.eq.s32.totalorder %s15, 0
      %p73 = por %p71, %p72
      %p74 = scmp.ne.s32.totalorder %s63, %s66
      %p75 = scmp.eq.s32.totalorder %s20, 23
      %p76 = por %p74, %p75
      %p77 = scmp.ne.s32.totalorder %s66, %s67
      %p78 = scmp.eq.s32.totalorder %s20, 0
      %p79 = por %p77, %p78
      %p80 = scmp.ne.s32.totalorder %s66, %s67
      %p81 = scmp.eq.s32.totalorder %s21, 23
      %p82 = por %p80, %p81
      %p84 = scmp.ne.s32.totalorder %s67, %s83
      %p85 = scmp.eq.s32.totalorder %s21, 0
      %p86 = por %p84, %p85
      %s87 = ssub.s32 %s23, %s30
      %s88 = ssub.s32 %s22, %s34
      %s89 = sor.u32 %s87, %s88
      %p90 = scmp.eq.s32.totalorder %s89, 0
      %s92 = sadd.s32 %s91, 1
      %s93 = scalar_select %p90, %s91, %s92
      %p96 = pneg %p90
      %p97 = scmp.eq.s32.totalorder %s15, 23
      %p98 = por %p96, %p97
      %p99 = scmp.ne.s32.totalorder %s91, %s94
      %p100 = scmp.eq.s32.totalorder %s15, 0
      %p101 = por %p99, %p100
      %p102 = scmp.ne.s32.totalorder %s91, %s94
      %p103 = scmp.eq.s32.totalorder %s20, 23
      %p104 = por %p102, %p103
      %p105 = scmp.ne.s32.totalorder %s94, %s95
      %p106 = scmp.eq.s32.totalorder %s20, 0
      %p107 = por %p105, %p106
      %p108 = scmp.ne.s32.totalorder %s94, %s95
      %p109 = scmp.eq.s32.totalorder %s21, 23
      %p110 = por %p108, %p109
      %p112 = scmp.ne.s32.totalorder %s95, %s111
      %p113 = scmp.eq.s32.totalorder %s21, 0
      %p114 = por %p112, %p113
      %p115 = scmp.le.s32.totalorder 1, %s15
      %p116 = scmp.lt.s32.totalorder %s15, 25
      %p117 = pnand %p115, %p116
      %p118 = pneg %p117
      // Predicated region
      $region9: #{tpu_custom_call.1} parent=5 // pred_check
        _
      $region10: #{tpu_custom_call.1} parent=5 // pred_check_branch
        %120 = sbr.rel (%p117) target = $region12
      $region11: #{tpu_custom_call.1} parent=5 // pred_region
        %s121 = ssub.s32 %s15, 1
        // Predicated region
        $region13: #{tpu_custom_call.1} parent=11 // pred_check
          %p122 = pneg %p53
        $region14: #{tpu_custom_call.1} parent=11 // pred_check_branch
          %124 = sbr.rel (%p122) target = $region16
        $region15: #{tpu_custom_call.1} parent=11 // pred_region
          %s125 = smul.u32 2, %s24
          %127 = vsyncadd [#allocation3], 0
          %s128 = smul.addr %s125, 8
          %s129 = scalar_lea.hbm %s0, %s128
          %s130 = sshll.u32 %s129, 4
          %s131 = int_to_ptr.hbm [resolvable:$true] %s130
          %s132 = sshll.u32 [#allocation2], 4
          %s133 = int_to_ptr.vmem [resolvable:$true] %s132
          %138 = dma.hbm_to_vmem [thread:$0]  %s131, 256, %s133, [#allocation3], 128, 128, 8
        $region16: #{tpu_custom_call.1} parent=11 // pred_fallthru
          _
      $region12: #{tpu_custom_call.1} parent=5 // pred_fallthru
        _
      %p139 = scmp.lt.s32.totalorder %s15, 24
      // Predicated region
      $region17: #{tpu_custom_call.1} parent=5 // pred_check
        %p140 = pneg %p139
      $region18: #{tpu_custom_call.1} parent=5 // pred_check_branch
        %142 = sbr.rel (%p140) target = $region20
      $region19: #{tpu_custom_call.1} parent=5 // pred_region
        // Predicated region
        $region21: #{tpu_custom_call.1} parent=19 // pred_check
          %p143 = pneg %p73
        $region22: #{tpu_custom_call.1} parent=19 // pred_check_branch
          %145 = sbr.rel (%p143) target = $region24
        $region23: #{tpu_custom_call.1} parent=19 // pred_region
          %s146 = sand.u32 %s63, 1
          %s147 = scalar_lea.sflag [#allocation6], %s146
          %s148 = sand.u32 %s63, 1
          %s149 = smul.addr %s148, 16
          %s150 = scalar_lea.vmem [#allocation5], %s149
          %152 = vsyncadd %s147, 0
          %s153 = smul.addr %s23, 4
          %s154 = smul.addr %s153, 4
          %s155 = scalar_lea.hbm %s1, %s154
          %s156 = sshll.u32 %s155, 4
          %s157 = int_to_ptr.hbm [resolvable:$true] %s156
          %s158 = sshll.u32 %s150, 4
          %s159 = int_to_ptr.vmem [resolvable:$true] %s158
          %164 = dma.hbm_to_vmem [thread:$0]  %s157, 256, %s159, %s147, 64, 64, 4
        $region24: #{tpu_custom_call.1} parent=19 // pred_fallthru
          _
      $region20: #{tpu_custom_call.1} parent=5 // pred_fallthru
        _
      %p165 = scmp.le.s32.totalorder 1, %s15
      %p166 = scmp.lt.s32.totalorder %s15, 25
      %p167 = pnand %p165, %p166
      %p168 = pneg %p167
      // Predicated region
      $region25: #{tpu_custom_call.1} parent=5 // pred_check
        _
      $region26: #{tpu_custom_call.1} parent=5 // pred_check_branch
        %170 = sbr.rel (%p167) target = $region28
      $region27: #{tpu_custom_call.1} parent=5 // pred_region
        %s171 = ssub.s32 %s15, 1
        // Predicated region
        $region29: #{tpu_custom_call.1} parent=27 // pred_check
          %p172 = pneg %p53
        $region30: #{tpu_custom_call.1} parent=27 // pred_check_branch
          %174 = sbr.rel (%p172) target = $region32
        $region31: #{tpu_custom_call.1} parent=27 // pred_region
          %176 = dma.done [#allocation3], 256
        $region32: #{tpu_custom_call.1} parent=27 // pred_fallthru
          _
        %s177 = sand.u32 %s66, 1
        %s178 = scalar_lea.sflag [#allocation6], %s177
        %s179 = sand.u32 %s66, 1
        %s180 = smul.addr %s179, 16
        %s181 = scalar_lea.vmem [#allocation5], %s180
        // Predicated region
        $region33: #{tpu_custom_call.1} parent=27 // pred_check
          %p182 = pneg %p79
        $region34: #{tpu_custom_call.1} parent=27 // pred_check_branch
          %184 = sbr.rel (%p182) target = $region36
        $region35: #{tpu_custom_call.1} parent=27 // pred_region
          %186 = dma.done %s178, 256
        $region36: #{tpu_custom_call.1} parent=27 // pred_fallthru
          _
        %p187 = pneg %p53
        %p188 = pneg %p50
        %s189 = sand.u32 %s66, 1
        %s190 = scalar_lea.sflag [#allocation6], %s189
        %s191 = sand.u32 %s66, 1
        %s192 = smul.addr %s191, 16
        %s193 = scalar_lea.vmem [#allocation5], %s192
        %p194 = pneg %p79
        %p195 = pneg %p76
        %p196 = pneg %p107
        %p197 = pneg %p104
        %s198 = sand.u32 %s94, 1
        %s199 = scalar_lea.sflag [#allocation4], %s198
        %s200 = sand.u32 %s94, 1
        %s201 = smul.addr %s200, 8
        %s202 = scalar_lea.vmem [#allocation7], %s201
        %s203 = smul.u32 2, %s24
        %s204 = smul.u32 2, %s24
        %v206 = vld [vmem:[#allocation2] sm:$0xff]
        %v207 = vld [vmem:[#allocation2 + $0x8] sm:$0xff]
        %v208 = vpack.c.bf16 %v207, %v206
        %v209 = vld [vmem:[%s181] sm:$0xf]
        %v210 = vld [vmem:[%s181 + $0x4] sm:$0xf]
        %v211 = vld [vmem:[%s181 + $0x8] sm:$0xf]
        %v212 = vld [vmem:[%s181 + $0xc] sm:$0xf]
        %v217 = vunpack.c.l.b16 %v209
        %v218 = vunpack.c.l.b16 %v210
        %v219 = vunpack.c.l.b16 %v211
        %v220 = vunpack.c.l.b16 %v212
        %v221 = vpack.c.b16 %v218, %v217
        %v222 = vpack.c.b16 %v220, %v219
        %vm225 = vcmask 261120
        %v227 = vsel %vm225, %v208, 0
        %229 = vmatpush.bf16.msra.mxu0 0
        %230 = vmatpush.bf16.msra.mxu0 0
        %231 = vmatpush.bf16.msra.mxu0 0
        %232 = vmatpush.bf16.msra.mxu0 0
        %233 = vmatpush.bf16.msra.mxu0 0
        %234 = vmatpush.bf16.msra.mxu0 0
        %235 = vmatpush.bf16.msra.mxu0 %v222
        %236 = vmatpush.bf16.msra.mxu0 %v221
        %237 = vmatmul.bf16.gmra.mxu0 %v227
        %v238 = vpop.f32.mrf.mxu0
        %v239 = vadd.f32 0.0, %v238
        %v240 = vpop.f32.mrf.mxu0
        %v241 = vadd.f32 0.0, %v240
        %242 = vdwg.mxu0
        %v243 = vpack.c.bf16 %v239, %v239
        %v244 = vpack.c.bf16 %v241, %v241
        %245 = vst [vmem:[%s202] sm:$0xf] %v243
        %246 = vst [vmem:[%s202 + $0x4] sm:$0xf] %v244
        %s247 = sand.u32 %s94, 1
        %s248 = scalar_lea.sflag [#allocation4], %s247
        %s249 = sand.u32 %s94, 1
        %s250 = smul.addr %s249, 8
        %s251 = scalar_lea.vmem [#allocation7], %s250
        // Predicated region
        $region37: #{tpu_custom_call.1} parent=27 // pred_check
          %p252 = pneg %p104
        $region38: #{tpu_custom_call.1} parent=27 // pred_check_branch
          %254 = sbr.rel (%p252) target = $region40
        $region39: #{tpu_custom_call.1} parent=27 // pred_region
          %s255 = smul.u32 2, %s24
          %257 = vsyncadd %s248, 0
          %s258 = smul.addr %s25, 2
          %s259 = sadd.s32 %s255, %s258
          %s260 = smul.addr %s259, 4
          %s261 = scalar_lea.hbm %s2, %s260
          %s262 = sshll.u32 %s251, 4
          %s263 = int_to_ptr.vmem [resolvable:$true] %s262
          %s264 = sshll.u32 %s261, 4
          %s265 = int_to_ptr.hbm [resolvable:$true] %s264
          %270 = dma.vmem_to_hbm [thread:$0]  %s263, 128, %s265, %s248, 64, 64, 4
        $region40: #{tpu_custom_call.1} parent=27 // pred_fallthru
          _
      $region28: #{tpu_custom_call.1} parent=5 // pred_fallthru
        _
      %p271 = scmp.le.s32.totalorder 2, %s15
      // Predicated region
      $region41: #{tpu_custom_call.1} parent=5 // pred_check
        %p272 = pneg %p271
      $region42: #{tpu_custom_call.1} parent=5 // pred_check_branch
        %274 = sbr.rel (%p272) target = $region44
      $region43: #{tpu_custom_call.1} parent=5 // pred_region
        %s275 = ssub.s32 %s15, 2
        // Predicated region
        $region45: #{tpu_custom_call.1} parent=43 // pred_check
          %p276 = pneg %p110
        $region46: #{tpu_custom_call.1} parent=43 // pred_check_branch
          %278 = sbr.rel (%p276) target = $region48
        $region47: #{tpu_custom_call.1} parent=43 // pred_region
          %s279 = sand.u32 %s95, 1
          %s280 = scalar_lea.sflag [#allocation4], %s279
          %s281 = sand.u32 %s95, 1
          %s282 = smul.addr %s281, 8
          %s283 = scalar_lea.vmem [#allocation7], %s282
          %285 = dma.done %s280, 128
        $region48: #{tpu_custom_call.1} parent=43 // pred_fallthru
          _
      $region44: #{tpu_custom_call.1} parent=5 // pred_fallthru
        _
    $region6: #{tpu_custom_call.1} parent=1 // loop_footer
      %s19 = sadd.s32 1, %s15
    $region7: #{tpu_custom_call.1} parent=1 // loop_footer_branch
      %14 = sbr.rel target = $region3
    $region8: #{tpu_custom_call.1} parent=1 // loop_exit
      _
    %286 = vsyncpa [#allocation3], 1
    %s287 = scalar_lea.sflag [#allocation3], 1
    %288 = vsyncpa %s287, 1
    %289 = vsyncpa [#allocation6], 1
    %s290 = scalar_lea.sflag [#allocation6], 1
    %291 = vsyncpa %s290, 1
    %292 = vsyncpa [#allocation4], 1
    %s293 = scalar_lea.sflag [#allocation4], 1
    %294 = vsyncpa %s293, 1

</llo_original>
